<compile_context>
chip_gen: v7x
topology: tpu7x:2x2x1
jax: 0.10.0
libtpu: 0.0.40
codegen_flags: <defaults>
</compile_context>

<pallas_src>
import jax
import jax.numpy as jnp
from jax import lax
from jax.experimental import pallas as pl
from jax.experimental.pallas import tpu as pltpu

INPUT_SIZE = 20      # vocab
EMBED_DIM = 10
HIDDEN_SIZE = 50
OUTPUT_SIZE = 3

_LANE_W = 1024                     # lane-axis width of the 2-D token layout
_TARGET_BLOCK_TOKENS = 256 * 1024  # tokens per grid step (~4 MiB/block, 2x buffered)
_STRIP = 8                         # sublane rows per register-resident inner strip


def _round_up(x, m):
    return ((x + m - 1) // m) * m


def _lookup_kernel(tok_ref, table_ref, out_ref):
    """VPU table lookup: out[c, r, l] = table[tok[r, l] * 3 + c].

    tok_ref   : (BR, C)  int32   token ids, lane-dense
    table_ref : (60,)    f32     SMEM: per-token log-prob table, row-major (vocab, channel)
    out_ref   : (3, BR, C) f32   log-probabilities, channel-major, fully dense stores
    """
    br, c = tok_ref.shape
    n_strips = br // _STRIP

    # 60 scalar SMEM reads, hoisted out of the strip loop.
    tab = [[table_ref[v * OUTPUT_SIZE + ch] for ch in range(OUTPUT_SIZE)]
           for v in range(INPUT_SIZE)]

    def strip_body(s, carry):
        r0 = pl.multiple_of(s * _STRIP, _STRIP)
        tok = tok_ref[pl.ds(r0, _STRIP), :]                     # (8, C) int32, in vregs
        # Start from vocab id 0; 19 compares + 57 selects per element, all on the VPU.
        # NOTE: ids outside [0, 20) silently fall back to row 0 (PyTorch would error).
        outs = [jnp.full((_STRIP, c), tab[0][ch], jnp.float32)
                for ch in range(OUTPUT_SIZE)]
        for v in range(1, INPUT_SIZE):
            m = tok == v
            for ch in range(OUTPUT_SIZE):
                outs[ch] = jnp.where(m, tab[v][ch], outs[ch])
        for ch in range(OUTPUT_SIZE):
            out_ref[ch, pl.ds(r0, _STRIP), :] = outs[ch]        # unmasked dense store
        return carry

    lax.fori_loop(0, n_strips, strip_body, 0)


def _fold_table(emb, w1_t, b1, w2_t, b2):
    """Fold Embedding -> fc1 -> ReLU -> fc2 -> LogSoftmax into a (V, O) table."""
    emb_f = emb.astype(jnp.float32)                                         # (V, E)
    h = jnp.maximum(emb_f @ w1_t.astype(jnp.float32)
                    + b1.astype(jnp.float32).reshape(1, -1), 0.0)           # (V, H)
    logits = h @ w2_t.astype(jnp.float32) + b2.astype(jnp.float32).reshape(1, -1)
    return jax.nn.log_softmax(logits, axis=-1).astype(jnp.float32)          # (V, O)


def protein_nn_forward(tokens, emb, w1_t, b1, w2_t, b2, *, use_pallas=True):
    """tokens: (B, S) int -> (B, S, OUTPUT_SIZE) float32 log-probs (matches PyTorch)."""
    B, S = tokens.shape
    N = B * S

    table = _fold_table(emb, w1_t, b1, w2_t, b2)          # (V, O) float32

    if not use_pallas:
        # Plain-JAX gather; preferable for tiny N where launch/pad overhead dominates.
        return table[tokens.astype(jnp.int32)]

    # --- 2-D lane-dense token layout, padded to whole blocks -------------------
    C = _LANE_W
    n_pad = _round_up(max(N, 1), _STRIP * C)              # rows multiple of 8
    R = n_pad // C
    BR = min(R, max(_STRIP, _TARGET_BLOCK_TOKENS // C))   # rows per block (multiple of 8)
    R_pad = _round_up(R, BR)
    n_pad = R_pad * C

    flat = tokens.reshape(-1).astype(jnp.int32)
    if n_pad != N:
        flat = jnp.pad(flat, (0, n_pad - N))              # pad with id 0; sliced off below
    tok2d = flat.reshape(R_pad, C)

    table_flat = table.reshape(-1)                        # (60,) row-major (vocab, channel)

    cost = pl.CostEstimate(
        flops=76 * n_pad,                                  # 19 cmp + 57 sel per token (VPU)
        transcendentals=0,
        bytes_accessed=4 * n_pad + 4 * OUTPUT_SIZE * n_pad + 4 * INPUT_SIZE * OUTPUT_SIZE,
    )

    out3 = pl.pallas_call(
        _lookup_kernel,
        out_shape=jax.ShapeDtypeStruct((OUTPUT_SIZE, R_pad, C), jnp.float32),
        grid=(R_pad // BR,),
        in_specs=[
            pl.BlockSpec((BR, C), lambda i: (i, 0)),                      # tokens, blocked on rows
            pl.BlockSpec(memory_space=pltpu.MemorySpace.SMEM),            # 20x3 table as SMEM scalars
        ],
        out_specs=pl.BlockSpec((OUTPUT_SIZE, BR, C), lambda i: (0, i, 0)),  # channel-major, dense
        compiler_params=pltpu.CompilerParams(
            # TODO(synk): on v7x, verify both TensorCores are used; switch this axis to
            # pltpu.CORE_PARALLEL if xprof shows one core idle.
            dimension_semantics=("parallel",),
            vmem_limit_bytes=32 * 1024 * 1024,
        ),
        cost_estimate=cost,
    )(tok2d, table_flat)

    # Channel-major (3, n_pad) -> PyTorch-shaped (B, S, 3); drop padded tokens.
    return out3.reshape(OUTPUT_SIZE, n_pad)[:, :N].T.reshape(B, S, OUTPUT_SIZE)


def _reference_forward(tokens, emb, w1_t, b1, w2_t, b2):
    """Pure-JAX reference mirroring the PyTorch module."""
    x = emb[tokens]                                            # (B, S, E)
    h = jnp.maximum(x @ w1_t + b1.reshape(1, 1, -1), 0.0)      # (B, S, H)
    logits = h @ w2_t + b2.reshape(1, 1, -1)                   # (B, S, O)
    return jax.nn.log_softmax(logits, axis=-1)


def init_params(key):
    """Deterministic parameter init mirroring the PyTorch module's shapes."""
    k_emb, k_w1, k_b1, k_w2, k_b2 = jax.random.split(key, 5)
    emb = jax.random.normal(k_emb, (INPUT_SIZE, EMBED_DIM), jnp.float32)        # N(0,1)
    lim1 = 1.0 / (EMBED_DIM ** 0.5)
    w1_t = jax.random.uniform(k_w1, (EMBED_DIM, HIDDEN_SIZE), jnp.float32, -lim1, lim1)
    b1 = jax.random.uniform(k_b1, (HIDDEN_SIZE,), jnp.float32, -lim1, lim1)
    lim2 = 1.0 / (HIDDEN_SIZE ** 0.5)
    w2_t = jax.random.uniform(k_w2, (HIDDEN_SIZE, OUTPUT_SIZE), jnp.float32, -lim2, lim2)
    b2 = jax.random.uniform(k_b2, (OUTPUT_SIZE,), jnp.float32, -lim2, lim2)
    return emb, w1_t, b1, w2_t, b2


if __name__ == "__main__":
    key = jax.random.PRNGKey(0)
    k_tok, k_params = jax.random.split(key)

    # Small synthetic "protein sequence" batch: batch=2, seq=8, ids in [0, 20).
    B, S = 2, 8
    tokens = jax.random.randint(k_tok, (B, S), 0, INPUT_SIZE, dtype=jnp.int32)

    emb, w1_t, b1, w2_t, b2 = init_params(k_params)

    out = protein_nn_forward(tokens, emb, w1_t, b1, w2_t, b2, use_pallas=True)
    out = jax.block_until_ready(out)

    # Sanity checks: shape, log-softmax normalization, agreement with pure-JAX reference.
    assert out.shape == (B, S, OUTPUT_SIZE), out.shape
    probs_sum = jnp.sum(jnp.exp(out), axis=-1)
    assert bool(jnp.all(jnp.abs(probs_sum - 1.0) < 1e-4)), "log-softmax rows do not normalize"

    ref = _reference_forward(tokens, emb, w1_t, b1, w2_t, b2)
    assert bool(jnp.all(jnp.abs(out - ref) < 1e-4)), "kernel output deviates from reference"

    print("KERNEL_OK")
</pallas_src>

<mosaic_0001>
module attributes {stable_mosaic.version = 11 : i64} {
  func.func @_lookup_kernel(%arg0: i32, %arg1: memref<8x1024xi32, #tpu.memory_space<vmem>>, %arg2: memref<60xf32, #tpu.memory_space<smem>>, %arg3: memref<3x8x1024xf32, #tpu.memory_space<vmem>>) attributes {dimension_semantics = [#tpu.dimension_semantics<parallel>], iteration_bounds = array<i64: 1>, scalar_prefetch = 0 : i64, scratch_operands = 0 : i64, tpu.core_type = #tpu.core_type<tc>, window_params = [{transform_indices = @transform_0, window_bounds = array<i64: 8, 1024>}, {transform_indices = @transform_1, window_bounds = array<i64: 60>}, {transform_indices = @transform_2, window_bounds = array<i64: 3, 8, 1024>}]} {
    %c0 = arith.constant 0 : index
    %0 = memref.load %arg2[%c0] : memref<60xf32, #tpu.memory_space<smem>>
    %c1 = arith.constant 1 : index
    %1 = memref.load %arg2[%c1] : memref<60xf32, #tpu.memory_space<smem>>
    %c2 = arith.constant 2 : index
    %2 = memref.load %arg2[%c2] : memref<60xf32, #tpu.memory_space<smem>>
    %c3 = arith.constant 3 : index
    %3 = memref.load %arg2[%c3] : memref<60xf32, #tpu.memory_space<smem>>
    %c4 = arith.constant 4 : index
    %4 = memref.load %arg2[%c4] : memref<60xf32, #tpu.memory_space<smem>>
    %c5 = arith.constant 5 : index
    %5 = memref.load %arg2[%c5] : memref<60xf32, #tpu.memory_space<smem>>
    %c6 = arith.constant 6 : index
    %6 = memref.load %arg2[%c6] : memref<60xf32, #tpu.memory_space<smem>>
    %c7 = arith.constant 7 : index
    %7 = memref.load %arg2[%c7] : memref<60xf32, #tpu.memory_space<smem>>
    %c8 = arith.constant 8 : index
    %8 = memref.load %arg2[%c8] : memref<60xf32, #tpu.memory_space<smem>>
    %c9 = arith.constant 9 : index
    %9 = memref.load %arg2[%c9] : memref<60xf32, #tpu.memory_space<smem>>
    %c10 = arith.constant 10 : index
    %10 = memref.load %arg2[%c10] : memref<60xf32, #tpu.memory_space<smem>>
    %c11 = arith.constant 11 : index
    %11 = memref.load %arg2[%c11] : memref<60xf32, #tpu.memory_space<smem>>
    %c12 = arith.constant 12 : index
    %12 = memref.load %arg2[%c12] : memref<60xf32, #tpu.memory_space<smem>>
    %c13 = arith.constant 13 : index
    %13 = memref.load %arg2[%c13] : memref<60xf32, #tpu.memory_space<smem>>
    %c14 = arith.constant 14 : index
    %14 = memref.load %arg2[%c14] : memref<60xf32, #tpu.memory_space<smem>>
    %c15 = arith.constant 15 : index
    %15 = memref.load %arg2[%c15] : memref<60xf32, #tpu.memory_space<smem>>
    %c16 = arith.constant 16 : index
    %16 = memref.load %arg2[%c16] : memref<60xf32, #tpu.memory_space<smem>>
    %c17 = arith.constant 17 : index
    %17 = memref.load %arg2[%c17] : memref<60xf32, #tpu.memory_space<smem>>
    %c18 = arith.constant 18 : index
    %18 = memref.load %arg2[%c18] : memref<60xf32, #tpu.memory_space<smem>>
    %c19 = arith.constant 19 : index
    %19 = memref.load %arg2[%c19] : memref<60xf32, #tpu.memory_space<smem>>
    %c20 = arith.constant 20 : index
    %20 = memref.load %arg2[%c20] : memref<60xf32, #tpu.memory_space<smem>>
    %c21 = arith.constant 21 : index
    %21 = memref.load %arg2[%c21] : memref<60xf32, #tpu.memory_space<smem>>
    %c22 = arith.constant 22 : index
    %22 = memref.load %arg2[%c22] : memref<60xf32, #tpu.memory_space<smem>>
    %c23 = arith.constant 23 : index
    %23 = memref.load %arg2[%c23] : memref<60xf32, #tpu.memory_space<smem>>
    %c24 = arith.constant 24 : index
    %24 = memref.load %arg2[%c24] : memref<60xf32, #tpu.memory_space<smem>>
    %c25 = arith.constant 25 : index
    %25 = memref.load %arg2[%c25] : memref<60xf32, #tpu.memory_space<smem>>
    %c26 = arith.constant 26 : index
    %26 = memref.load %arg2[%c26] : memref<60xf32, #tpu.memory_space<smem>>
    %c27 = arith.constant 27 : index
    %27 = memref.load %arg2[%c27] : memref<60xf32, #tpu.memory_space<smem>>
    %c28 = arith.constant 28 : index
    %28 = memref.load %arg2[%c28] : memref<60xf32, #tpu.memory_space<smem>>
    %c29 = arith.constant 29 : index
    %29 = memref.load %arg2[%c29] : memref<60xf32, #tpu.memory_space<smem>>
    %c30 = arith.constant 30 : index
    %30 = memref.load %arg2[%c30] : memref<60xf32, #tpu.memory_space<smem>>
    %c31 = arith.constant 31 : index
    %31 = memref.load %arg2[%c31] : memref<60xf32, #tpu.memory_space<smem>>
    %c32 = arith.constant 32 : index
    %32 = memref.load %arg2[%c32] : memref<60xf32, #tpu.memory_space<smem>>
    %c33 = arith.constant 33 : index
    %33 = memref.load %arg2[%c33] : memref<60xf32, #tpu.memory_space<smem>>
    %c34 = arith.constant 34 : index
    %34 = memref.load %arg2[%c34] : memref<60xf32, #tpu.memory_space<smem>>
    %c35 = arith.constant 35 : index
    %35 = memref.load %arg2[%c35] : memref<60xf32, #tpu.memory_space<smem>>
    %c36 = arith.constant 36 : index
    %36 = memref.load %arg2[%c36] : memref<60xf32, #tpu.memory_space<smem>>
    %c37 = arith.constant 37 : index
    %37 = memref.load %arg2[%c37] : memref<60xf32, #tpu.memory_space<smem>>
    %c38 = arith.constant 38 : index
    %38 = memref.load %arg2[%c38] : memref<60xf32, #tpu.memory_space<smem>>
    %c39 = arith.constant 39 : index
    %39 = memref.load %arg2[%c39] : memref<60xf32, #tpu.memory_space<smem>>
    %c40 = arith.constant 40 : index
    %40 = memref.load %arg2[%c40] : memref<60xf32, #tpu.memory_space<smem>>
    %c41 = arith.constant 41 : index
    %41 = memref.load %arg2[%c41] : memref<60xf32, #tpu.memory_space<smem>>
    %c42 = arith.constant 42 : index
    %42 = memref.load %arg2[%c42] : memref<60xf32, #tpu.memory_space<smem>>
    %c43 = arith.constant 43 : index
    %43 = memref.load %arg2[%c43] : memref<60xf32, #tpu.memory_space<smem>>
    %c44 = arith.constant 44 : index
    %44 = memref.load %arg2[%c44] : memref<60xf32, #tpu.memory_space<smem>>
    %c45 = arith.constant 45 : index
    %45 = memref.load %arg2[%c45] : memref<60xf32, #tpu.memory_space<smem>>
    %c46 = arith.constant 46 : index
    %46 = memref.load %arg2[%c46] : memref<60xf32, #tpu.memory_space<smem>>
    %c47 = arith.constant 47 : index
    %47 = memref.load %arg2[%c47] : memref<60xf32, #tpu.memory_space<smem>>
    %c48 = arith.constant 48 : index
    %48 = memref.load %arg2[%c48] : memref<60xf32, #tpu.memory_space<smem>>
    %c49 = arith.constant 49 : index
    %49 = memref.load %arg2[%c49] : memref<60xf32, #tpu.memory_space<smem>>
    %c50 = arith.constant 50 : index
    %50 = memref.load %arg2[%c50] : memref<60xf32, #tpu.memory_space<smem>>
    %c51 = arith.constant 51 : index
    %51 = memref.load %arg2[%c51] : memref<60xf32, #tpu.memory_space<smem>>
    %c52 = arith.constant 52 : index
    %52 = memref.load %arg2[%c52] : memref<60xf32, #tpu.memory_space<smem>>
    %c53 = arith.constant 53 : index
    %53 = memref.load %arg2[%c53] : memref<60xf32, #tpu.memory_space<smem>>
    %c54 = arith.constant 54 : index
    %54 = memref.load %arg2[%c54] : memref<60xf32, #tpu.memory_space<smem>>
    %c55 = arith.constant 55 : index
    %55 = memref.load %arg2[%c55] : memref<60xf32, #tpu.memory_space<smem>>
    %c56 = arith.constant 56 : index
    %56 = memref.load %arg2[%c56] : memref<60xf32, #tpu.memory_space<smem>>
    %c57 = arith.constant 57 : index
    %57 = memref.load %arg2[%c57] : memref<60xf32, #tpu.memory_space<smem>>
    %c58 = arith.constant 58 : index
    %58 = memref.load %arg2[%c58] : memref<60xf32, #tpu.memory_space<smem>>
    %c59 = arith.constant 59 : index
    %59 = memref.load %arg2[%c59] : memref<60xf32, #tpu.memory_space<smem>>
    %c0_i32 = arith.constant 0 : i32
    %c8_i32 = arith.constant 8 : i32
    %60 = arith.muli %c0_i32, %c8_i32 : i32
    %61 = tpu.assume_multiple %60, 8 : i32
    %62 = arith.index_cast %61 : i32 to index
    %c0_0 = arith.constant 0 : index
    %63 = vector.load %arg1[%62, %c0_0] : memref<8x1024xi32, #tpu.memory_space<vmem>>, vector<8x1024xi32>
    %64 = vector.broadcast %0 : f32 to vector<8x1024xf32>
    %65 = vector.broadcast %1 : f32 to vector<8x1024xf32>
    %66 = vector.broadcast %2 : f32 to vector<8x1024xf32>
    %c1_i32 = arith.constant 1 : i32
    %67 = vector.broadcast %c1_i32 : i32 to vector<8x1024xi32>
    %68 = arith.cmpi eq, %63, %67 : vector<8x1024xi32>
    %69 = vector.broadcast %3 : f32 to vector<8x1024xf32>
    %70 = arith.select %68, %69, %64 : vector<8x1024xi1>, vector<8x1024xf32>
    %71 = vector.broadcast %4 : f32 to vector<8x1024xf32>
    %72 = arith.select %68, %71, %65 : vector<8x1024xi1>, vector<8x1024xf32>
    %73 = vector.broadcast %5 : f32 to vector<8x1024xf32>
    %74 = arith.select %68, %73, %66 : vector<8x1024xi1>, vector<8x1024xf32>
    %c2_i32 = arith.constant 2 : i32
    %75 = vector.broadcast %c2_i32 : i32 to vector<8x1024xi32>
    %76 = arith.cmpi eq, %63, %75 : vector<8x1024xi32>
    %77 = vector.broadcast %6 : f32 to vector<8x1024xf32>
    %78 = arith.select %76, %77, %70 : vector<8x1024xi1>, vector<8x1024xf32>
    %79 = vector.broadcast %7 : f32 to vector<8x1024xf32>
    %80 = arith.select %76, %79, %72 : vector<8x1024xi1>, vector<8x1024xf32>
    %81 = vector.broadcast %8 : f32 to vector<8x1024xf32>
    %82 = arith.select %76, %81, %74 : vector<8x1024xi1>, vector<8x1024xf32>
    %c3_i32 = arith.constant 3 : i32
    %83 = vector.broadcast %c3_i32 : i32 to vector<8x1024xi32>
    %84 = arith.cmpi eq, %63, %83 : vector<8x1024xi32>
    %85 = vector.broadcast %9 : f32 to vector<8x1024xf32>
    %86 = arith.select %84, %85, %78 : vector<8x1024xi1>, vector<8x1024xf32>
    %87 = vector.broadcast %10 : f32 to vector<8x1024xf32>
    %88 = arith.select %84, %87, %80 : vector<8x1024xi1>, vector<8x1024xf32>
    %89 = vector.broadcast %11 : f32 to vector<8x1024xf32>
    %90 = arith.select %84, %89, %82 : vector<8x1024xi1>, vector<8x1024xf32>
    %c4_i32 = arith.constant 4 : i32
    %91 = vector.broadcast %c4_i32 : i32 to vector<8x1024xi32>
    %92 = arith.cmpi eq, %63, %91 : vector<8x1024xi32>
    %93 = vector.broadcast %12 : f32 to vector<8x1024xf32>
    %94 = arith.select %92, %93, %86 : vector<8x1024xi1>, vector<8x1024xf32>
    %95 = vector.broadcast %13 : f32 to vector<8x1024xf32>
    %96 = arith.select %92, %95, %88 : vector<8x1024xi1>, vector<8x1024xf32>
    %97 = vector.broadcast %14 : f32 to vector<8x1024xf32>
    %98 = arith.select %92, %97, %90 : vector<8x1024xi1>, vector<8x1024xf32>
    %c5_i32 = arith.constant 5 : i32
    %99 = vector.broadcast %c5_i32 : i32 to vector<8x1024xi32>
    %100 = arith.cmpi eq, %63, %99 : vector<8x1024xi32>
    %101 = vector.broadcast %15 : f32 to vector<8x1024xf32>
    %102 = arith.select %100, %101, %94 : vector<8x1024xi1>, vector<8x1024xf32>
    %103 = vector.broadcast %16 : f32 to vector<8x1024xf32>
    %104 = arith.select %100, %103, %96 : vector<8x1024xi1>, vector<8x1024xf32>
    %105 = vector.broadcast %17 : f32 to vector<8x1024xf32>
    %106 = arith.select %100, %105, %98 : vector<8x1024xi1>, vector<8x1024xf32>
    %c6_i32 = arith.constant 6 : i32
    %107 = vector.broadcast %c6_i32 : i32 to vector<8x1024xi32>
    %108 = arith.cmpi eq, %63, %107 : vector<8x1024xi32>
    %109 = vector.broadcast %18 : f32 to vector<8x1024xf32>
    %110 = arith.select %108, %109, %102 : vector<8x1024xi1>, vector<8x1024xf32>
    %111 = vector.broadcast %19 : f32 to vector<8x1024xf32>
    %112 = arith.select %108, %111, %104 : vector<8x1024xi1>, vector<8x1024xf32>
    %113 = vector.broadcast %20 : f32 to vector<8x1024xf32>
    %114 = arith.select %108, %113, %106 : vector<8x1024xi1>, vector<8x1024xf32>
    %c7_i32 = arith.constant 7 : i32
    %115 = vector.broadcast %c7_i32 : i32 to vector<8x1024xi32>
    %116 = arith.cmpi eq, %63, %115 : vector<8x1024xi32>
    %117 = vector.broadcast %21 : f32 to vector<8x1024xf32>
    %118 = arith.select %116, %117, %110 : vector<8x1024xi1>, vector<8x1024xf32>
    %119 = vector.broadcast %22 : f32 to vector<8x1024xf32>
    %120 = arith.select %116, %119, %112 : vector<8x1024xi1>, vector<8x1024xf32>
    %121 = vector.broadcast %23 : f32 to vector<8x1024xf32>
    %122 = arith.select %116, %121, %114 : vector<8x1024xi1>, vector<8x1024xf32>
    %c8_i32_1 = arith.constant 8 : i32
    %123 = vector.broadcast %c8_i32_1 : i32 to vector<8x1024xi32>
    %124 = arith.cmpi eq, %63, %123 : vector<8x1024xi32>
    %125 = vector.broadcast %24 : f32 to vector<8x1024xf32>
    %126 = arith.select %124, %125, %118 : vector<8x1024xi1>, vector<8x1024xf32>
    %127 = vector.broadcast %25 : f32 to vector<8x1024xf32>
    %128 = arith.select %124, %127, %120 : vector<8x1024xi1>, vector<8x1024xf32>
    %129 = vector.broadcast %26 : f32 to vector<8x1024xf32>
    %130 = arith.select %124, %129, %122 : vector<8x1024xi1>, vector<8x1024xf32>
    %c9_i32 = arith.constant 9 : i32
    %131 = vector.broadcast %c9_i32 : i32 to vector<8x1024xi32>
    %132 = arith.cmpi eq, %63, %131 : vector<8x1024xi32>
    %133 = vector.broadcast %27 : f32 to vector<8x1024xf32>
    %134 = arith.select %132, %133, %126 : vector<8x1024xi1>, vector<8x1024xf32>
    %135 = vector.broadcast %28 : f32 to vector<8x1024xf32>
    %136 = arith.select %132, %135, %128 : vector<8x1024xi1>, vector<8x1024xf32>
    %137 = vector.broadcast %29 : f32 to vector<8x1024xf32>
    %138 = arith.select %132, %137, %130 : vector<8x1024xi1>, vector<8x1024xf32>
    %c10_i32 = arith.constant 10 : i32
    %139 = vector.broadcast %c10_i32 : i32 to vector<8x1024xi32>
    %140 = arith.cmpi eq, %63, %139 : vector<8x1024xi32>
    %141 = vector.broadcast %30 : f32 to vector<8x1024xf32>
    %142 = arith.select %140, %141, %134 : vector<8x1024xi1>, vector<8x1024xf32>
    %143 = vector.broadcast %31 : f32 to vector<8x1024xf32>
    %144 = arith.select %140, %143, %136 : vector<8x1024xi1>, vector<8x1024xf32>
    %145 = vector.broadcast %32 : f32 to vector<8x1024xf32>
    %146 = arith.select %140, %145, %138 : vector<8x1024xi1>, vector<8x1024xf32>
    %c11_i32 = arith.constant 11 : i32
    %147 = vector.broadcast %c11_i32 : i32 to vector<8x1024xi32>
    %148 = arith.cmpi eq, %63, %147 : vector<8x1024xi32>
    %149 = vector.broadcast %33 : f32 to vector<8x1024xf32>
    %150 = arith.select %148, %149, %142 : vector<8x1024xi1>, vector<8x1024xf32>
    %151 = vector.broadcast %34 : f32 to vector<8x1024xf32>
    %152 = arith.select %148, %151, %144 : vector<8x1024xi1>, vector<8x1024xf32>
    %153 = vector.broadcast %35 : f32 to vector<8x1024xf32>
    %154 = arith.select %148, %153, %146 : vector<8x1024xi1>, vector<8x1024xf32>
    %c12_i32 = arith.constant 12 : i32
    %155 = vector.broadcast %c12_i32 : i32 to vector<8x1024xi32>
    %156 = arith.cmpi eq, %63, %155 : vector<8x1024xi32>
    %157 = vector.broadcast %36 : f32 to vector<8x1024xf32>
    %158 = arith.select %156, %157, %150 : vector<8x1024xi1>, vector<8x1024xf32>
    %159 = vector.broadcast %37 : f32 to vector<8x1024xf32>
    %160 = arith.select %156, %159, %152 : vector<8x1024xi1>, vector<8x1024xf32>
    %161 = vector.broadcast %38 : f32 to vector<8x1024xf32>
    %162 = arith.select %156, %161, %154 : vector<8x1024xi1>, vector<8x1024xf32>
    %c13_i32 = arith.constant 13 : i32
    %163 = vector.broadcast %c13_i32 : i32 to vector<8x1024xi32>
    %164 = arith.cmpi eq, %63, %163 : vector<8x1024xi32>
    %165 = vector.broadcast %39 : f32 to vector<8x1024xf32>
    %166 = arith.select %164, %165, %158 : vector<8x1024xi1>, vector<8x1024xf32>
    %167 = vector.broadcast %40 : f32 to vector<8x1024xf32>
    %168 = arith.select %164, %167, %160 : vector<8x1024xi1>, vector<8x1024xf32>
    %169 = vector.broadcast %41 : f32 to vector<8x1024xf32>
    %170 = arith.select %164, %169, %162 : vector<8x1024xi1>, vector<8x1024xf32>
    %c14_i32 = arith.constant 14 : i32
    %171 = vector.broadcast %c14_i32 : i32 to vector<8x1024xi32>
    %172 = arith.cmpi eq, %63, %171 : vector<8x1024xi32>
    %173 = vector.broadcast %42 : f32 to vector<8x1024xf32>
    %174 = arith.select %172, %173, %166 : vector<8x1024xi1>, vector<8x1024xf32>
    %175 = vector.broadcast %43 : f32 to vector<8x1024xf32>
    %176 = arith.select %172, %175, %168 : vector<8x1024xi1>, vector<8x1024xf32>
    %177 = vector.broadcast %44 : f32 to vector<8x1024xf32>
    %178 = arith.select %172, %177, %170 : vector<8x1024xi1>, vector<8x1024xf32>
    %c15_i32 = arith.constant 15 : i32
    %179 = vector.broadcast %c15_i32 : i32 to vector<8x1024xi32>
    %180 = arith.cmpi eq, %63, %179 : vector<8x1024xi32>
    %181 = vector.broadcast %45 : f32 to vector<8x1024xf32>
    %182 = arith.select %180, %181, %174 : vector<8x1024xi1>, vector<8x1024xf32>
    %183 = vector.broadcast %46 : f32 to vector<8x1024xf32>
    %184 = arith.select %180, %183, %176 : vector<8x1024xi1>, vector<8x1024xf32>
    %185 = vector.broadcast %47 : f32 to vector<8x1024xf32>
    %186 = arith.select %180, %185, %178 : vector<8x1024xi1>, vector<8x1024xf32>
    %c16_i32 = arith.constant 16 : i32
    %187 = vector.broadcast %c16_i32 : i32 to vector<8x1024xi32>
    %188 = arith.cmpi eq, %63, %187 : vector<8x1024xi32>
    %189 = vector.broadcast %48 : f32 to vector<8x1024xf32>
    %190 = arith.select %188, %189, %182 : vector<8x1024xi1>, vector<8x1024xf32>
    %191 = vector.broadcast %49 : f32 to vector<8x1024xf32>
    %192 = arith.select %188, %191, %184 : vector<8x1024xi1>, vector<8x1024xf32>
    %193 = vector.broadcast %50 : f32 to vector<8x1024xf32>
    %194 = arith.select %188, %193, %186 : vector<8x1024xi1>, vector<8x1024xf32>
    %c17_i32 = arith.constant 17 : i32
    %195 = vector.broadcast %c17_i32 : i32 to vector<8x1024xi32>
    %196 = arith.cmpi eq, %63, %195 : vector<8x1024xi32>
    %197 = vector.broadcast %51 : f32 to vector<8x1024xf32>
    %198 = arith.select %196, %197, %190 : vector<8x1024xi1>, vector<8x1024xf32>
    %199 = vector.broadcast %52 : f32 to vector<8x1024xf32>
    %200 = arith.select %196, %199, %192 : vector<8x1024xi1>, vector<8x1024xf32>
    %201 = vector.broadcast %53 : f32 to vector<8x1024xf32>
    %202 = arith.select %196, %201, %194 : vector<8x1024xi1>, vector<8x1024xf32>
    %c18_i32 = arith.constant 18 : i32
    %203 = vector.broadcast %c18_i32 : i32 to vector<8x1024xi32>
    %204 = arith.cmpi eq, %63, %203 : vector<8x1024xi32>
    %205 = vector.broadcast %54 : f32 to vector<8x1024xf32>
    %206 = arith.select %204, %205, %198 : vector<8x1024xi1>, vector<8x1024xf32>
    %207 = vector.broadcast %55 : f32 to vector<8x1024xf32>
    %208 = arith.select %204, %207, %200 : vector<8x1024xi1>, vector<8x1024xf32>
    %209 = vector.broadcast %56 : f32 to vector<8x1024xf32>
    %210 = arith.select %204, %209, %202 : vector<8x1024xi1>, vector<8x1024xf32>
    %c19_i32 = arith.constant 19 : i32
    %211 = vector.broadcast %c19_i32 : i32 to vector<8x1024xi32>
    %212 = arith.cmpi eq, %63, %211 : vector<8x1024xi32>
    %213 = vector.broadcast %57 : f32 to vector<8x1024xf32>
    %214 = arith.select %212, %213, %206 : vector<8x1024xi1>, vector<8x1024xf32>
    %215 = vector.broadcast %58 : f32 to vector<8x1024xf32>
    %216 = arith.select %212, %215, %208 : vector<8x1024xi1>, vector<8x1024xf32>
    %217 = vector.broadcast %59 : f32 to vector<8x1024xf32>
    %218 = arith.select %212, %217, %210 : vector<8x1024xi1>, vector<8x1024xf32>
    %c0_2 = arith.constant 0 : index
    %219 = arith.index_cast %61 : i32 to index
    %c0_3 = arith.constant 0 : index
    %220 = vector.load %arg3[%c0_2, %219, %c0_3] : memref<3x8x1024xf32, #tpu.memory_space<vmem>>, vector<1x8x1024xf32>
    %221 = vector.shape_cast %220 : vector<1x8x1024xf32> to vector<8x1024xf32>
    %222 = vector.shape_cast %214 : vector<8x1024xf32> to vector<1x8x1024xf32>
    tpu.vector_store %arg3[%c0_2, %219, %c0_3], %222 {strides = array<i32>} : memref<3x8x1024xf32, #tpu.memory_space<vmem>>, vector<1x8x1024xf32>,
    %c1_4 = arith.constant 1 : index
    %223 = arith.index_cast %61 : i32 to index
    %c0_5 = arith.constant 0 : index
    %224 = vector.load %arg3[%c1_4, %223, %c0_5] : memref<3x8x1024xf32, #tpu.memory_space<vmem>>, vector<1x8x1024xf32>
    %225 = vector.shape_cast %224 : vector<1x8x1024xf32> to vector<8x1024xf32>
    %226 = vector.shape_cast %216 : vector<8x1024xf32> to vector<1x8x1024xf32>
    tpu.vector_store %arg3[%c1_4, %223, %c0_5], %226 {strides = array<i32>} : memref<3x8x1024xf32, #tpu.memory_space<vmem>>, vector<1x8x1024xf32>,
    %c2_6 = arith.constant 2 : index
    %227 = arith.index_cast %61 : i32 to index
    %c0_7 = arith.constant 0 : index
    %228 = vector.load %arg3[%c2_6, %227, %c0_7] : memref<3x8x1024xf32, #tpu.memory_space<vmem>>, vector<1x8x1024xf32>
    %229 = vector.shape_cast %228 : vector<1x8x1024xf32> to vector<8x1024xf32>
    %230 = vector.shape_cast %218 : vector<8x1024xf32> to vector<1x8x1024xf32>
    tpu.vector_store %arg3[%c2_6, %227, %c0_7], %230 {strides = array<i32>} : memref<3x8x1024xf32, #tpu.memory_space<vmem>>, vector<1x8x1024xf32>,
    %c1_i32_8 = arith.constant 1 : i32
    return
  }
  func.func @transform_0(%arg0: i32) -> (i32, i32) {
    %c0_i32 = arith.constant 0 : i32
    %c0_i32_0 = arith.constant 0 : i32
    return %arg0, %c0_i32 : i32, i32
  }
  func.func @transform_1(%arg0: i32) -> i32 {
    %c0_i32 = arith.constant 0 : i32
    %c0_i32_0 = arith.constant 0 : i32
    return %c0_i32 : i32
  }
  func.func @transform_2(%arg0: i32) -> (i32, i32, i32) {
    %c0_i32 = arith.constant 0 : i32
    %c0_i32_0 = arith.constant 0 : i32
    %c0_i32_1 = arith.constant 0 : i32
    return %c0_i32, %arg0, %c0_i32_0 : i32, i32, i32
  }
}

</mosaic_0001>

<llo_original>
// kernel: tpu_custom_call.1
$region0: #{tpu_custom_call.1}
  #allocation0 [shape = 'u32[]', space=smem, size = 0x4, offset = 0x4, fixed_abs, tag = 'smem constant byte address 0x4 - core index']
  #allocation1 [shape = 'u32[144,128]{1,0:T(1,128)}', space=vmem, size = 0x12000, scoped, tag = 'internal scratch']
  %s0 = inlined_call_operand.hbm [shape: s32[8,1024], index: 0, kind: input, shape index: {}]
  %s1 = inlined_call_operand.vmem [shape: f32[60], index: 1, kind: input, shape index: {}]
  %s2 = inlined_call_operand.hbm [shape: f32[3,8,1024], index: 2, kind: output, shape index: {}]
  %s3 = sld [smem:[#allocation0]]
  $region26: #{tpu_custom_call.1} parent=0
    _
  %s5 = ssub.s32 1, %s3
  %s6 = scalar_select 0, %s5, %s3
  $region1: #{tpu_custom_call.1} parent=0
    #allocation2 [shape = 'u8[32768]{0}', space=vmem, size = 0x8000, scoped, tag = 'input window, operand 0, single buffered']
    #allocation3 [shape = 's32[1]{0}', space=sflag, size = 0x4, scoped, tag = 'scoped memory for tpu_custom_call.1']
    #allocation4 [shape = 's32[1]{0}', space=sflag, size = 0x4, scoped, tag = 'scoped memory for tpu_custom_call.1']
    #allocation5 [shape = 's32[1]{0}', space=sflag, size = 0x4, scoped, tag = 'scoped memory for tpu_custom_call.1']
    #allocation6 [shape = 'u8[512]{0}', space=smem, size = 0x200, scoped, tag = 'input window, operand 1, single buffered']
    #allocation7 [shape = 'u8[98304]{0}', space=vmem, size = 0x18000, scoped, tag = 'output window, operand 0, single buffered']
    %7 = vsyncpa [#allocation3], 0
    %8 = vsyncpa [#allocation5], 0
    %9 = vsyncpa [#allocation4], 0
    // Predicated region
    $region2: #{tpu_custom_call.1} parent=1 // pred_check
      _
    $region3: #{tpu_custom_call.1} parent=1 // pred_check_branch
      %11 = sbr.rel (0) target = $region5
    $region4: #{tpu_custom_call.1} parent=1 // pred_region
      %s13 = ssub.s32 1024, 1024
      %14 = vsyncadd [#allocation3], %s13
      %s16 = sshll.u32 [#allocation2], 4
      %s17 = int_to_ptr.vmem [resolvable:$true] %s16
      %19 = dma.hbm_to_vmem [thread:$0]  %s0, 1024, %s17, [#allocation3]
    $region5: #{tpu_custom_call.1} parent=1 // pred_fallthru
      _
    // Predicated region
    $region6: #{tpu_custom_call.1} parent=1 // pred_check
      _
    $region7: #{tpu_custom_call.1} parent=1 // pred_check_branch
      %21 = sbr.rel (0) target = $region9
    $region8: #{tpu_custom_call.1} parent=1 // pred_region
      %s23 = ssub.s32 16, 16
      %24 = vsyncadd [#allocation5], %s23
      %s26 = sshll.u32 %s1, 4
      %s27 = int_to_ptr.vmem [resolvable:$true] %s26
      %29 = dma.vmem_to_smem %s27, 16, [#allocation6], [#allocation5]
    $region9: #{tpu_custom_call.1} parent=1 // pred_fallthru
      _
    // Predicated region
    $region10: #{tpu_custom_call.1} parent=1 // pred_check
      _
    $region11: #{tpu_custom_call.1} parent=1 // pred_check_branch
      %31 = sbr.rel (0) target = $region13
    $region12: #{tpu_custom_call.1} parent=1 // pred_region
      %32 = dma.done [#allocation3], 1024
    $region13: #{tpu_custom_call.1} parent=1 // pred_fallthru
      _
    // Predicated region
    $region14: #{tpu_custom_call.1} parent=1 // pred_check
      _
    $region15: #{tpu_custom_call.1} parent=1 // pred_check_branch
      %34 = sbr.rel (0) target = $region17
    $region16: #{tpu_custom_call.1} parent=1 // pred_region
      %35 = dma.done [#allocation5], 16
    $region17: #{tpu_custom_call.1} parent=1 // pred_fallthru
      _
    %36 = sfence
    %s37 = sld [smem:[#allocation6]]
    %s38 = sld [smem:[#allocation6 + $0x1]]
    %s39 = sld [smem:[#allocation6 + $0x2]]
    %s40 = sld [smem:[#allocation6 + $0x3]]
    %s41 = sld [smem:[#allocation6 + $0x4]]
    %s42 = sld [smem:[#allocation6 + $0x5]]
    %s43 = sld [smem:[#allocation6 + $0x6]]
    %s44 = sld [smem:[#allocation6 + $0x7]]
    %s45 = sld [smem:[#allocation6 + $0x8]]
    %s46 = sld [smem:[#allocation6 + $0x9]]
    %s47 = sld [smem:[#allocation6 + $0xa]]
    %s48 = sld [smem:[#allocation6 + $0xb]]
    %s49 = sld [smem:[#allocation6 + $0xc]]
    %s50 = sld [smem:[#allocation6 + $0xd]]
    %s51 = sld [smem:[#allocation6 + $0xe]]
    %s52 = sld [smem:[#allocation6 + $0xf]]
    %s53 = sld [smem:[#allocation6 + $0x10]]
    %s54 = sld [smem:[#allocation6 + $0x11]]
    %s55 = sld [smem:[#allocation6 + $0x12]]
    %s56 = sld [smem:[#allocation6 + $0x13]]
    %s57 = sld [smem:[#allocation6 + $0x14]]
    %s58 = sld [smem:[#allocation6 + $0x15]]
    %s59 = sld [smem:[#allocation6 + $0x16]]
    %s60 = sld [smem:[#allocation6 + $0x17]]
    %s61 = sld [smem:[#allocation6 + $0x18]]
    %s62 = sld [smem:[#allocation6 + $0x19]]
    %s63 = sld [smem:[#allocation6 + $0x1a]]
    %s64 = sld [smem:[#allocation6 + $0x1b]]
    %s65 = sld [smem:[#allocation6 + $0x1c]]
    %s66 = sld [smem:[#allocation6 + $0x1d]]
    %s67 = sld [smem:[#allocation6 + $0x1e]]
    %s68 = sld [smem:[#allocation6 + $0x1f]]
    %s69 = sld [smem:[#allocation6 + $0x20]]
    %s70 = sld [smem:[#allocation6 + $0x21]]
    %s71 = sld [smem:[#allocation6 + $0x22]]
    %s72 = sld [smem:[#allocation6 + $0x23]]
    %s73 = sld [smem:[#allocation6 + $0x24]]
    %s74 = sld [smem:[#allocation6 + $0x25]]
    %s75 = sld [smem:[#allocation6 + $0x26]]
    %s76 = sld [smem:[#allocation6 + $0x27]]
    %s77 = sld [smem:[#allocation6 + $0x28]]
    %s78 = sld [smem:[#allocation6 + $0x29]]
    %s79 = sld [smem:[#allocation6 + $0x2a]]
    %s80 = sld [smem:[#allocation6 + $0x2b]]
    %s81 = sld [smem:[#allocation6 + $0x2c]]
    %s82 = sld [smem:[#allocation6 + $0x2d]]
    %s83 = sld [smem:[#allocation6 + $0x2e]]
    %s84 = sld [smem:[#allocation6 + $0x2f]]
    %s85 = sld [smem:[#allocation6 + $0x30]]
    %s86 = sld [smem:[#allocation6 + $0x31]]
    %s87 = sld [smem:[#allocation6 + $0x32]]
    %s88 = sld [smem:[#allocation6 + $0x33]]
    %s89 = sld [smem:[#allocation6 + $0x34]]
    %s90 = sld [smem:[#allocation6 + $0x35]]
    %s91 = sld [smem:[#allocation6 + $0x36]]
    %s92 = sld [smem:[#allocation6 + $0x37]]
    %s93 = sld [smem:[#allocation6 + $0x38]]
    %s94 = sld [smem:[#allocation6 + $0x39]]
    %s95 = sld [smem:[#allocation6 + $0x3a]]
    %s96 = sld [smem:[#allocation6 + $0x3b]]
    %s97 = smul.u32 0, 8
    %s98 = smul.addr %s97, 8
    %s99 = scalar_lea.vmem [#allocation2], %s98
    %v100 = vld [vmem:[%s99] sm:$0xff]
    %v101 = vld [vmem:[%s99 + $0x8] sm:$0xff]
    %v102 = vld [vmem:[%s99 + $0x10] sm:$0xff]
    %v103 = vld [vmem:[%s99 + $0x18] sm:$0xff]
    %v104 = vld [vmem:[%s99 + $0x20] sm:$0xff]
    %v105 = vld [vmem:[%s99 + $0x28] sm:$0xff]
    %v106 = vld [vmem:[%s99 + $0x30] sm:$0xff]
    %v107 = vld [vmem:[%s99 + $0x38] sm:$0xff]
    %v108 = vstv %s37
    %v109 = vstv %s38
    %v110 = vstv %s39
    %vm111 = vcmp.eq.s32.totalorder %v100, 1
    %vm112 = vcmp.eq.s32.totalorder %v101, 1
    %vm113 = vcmp.eq.s32.totalorder %v102, 1
    %vm114 = vcmp.eq.s32.totalorder %v103, 1
    %vm115 = vcmp.eq.s32.totalorder %v104, 1
    %vm116 = vcmp.eq.s32.totalorder %v105, 1
    %vm117 = vcmp.eq.s32.totalorder %v106, 1
    %vm118 = vcmp.eq.s32.totalorder %v107, 1
    %v119 = vstv %s40
    %v120 = vsel %vm111, %v119, %v108
    %v121 = vsel %vm112, %v119, %v108
    %v122 = vsel %vm113, %v119, %v108
    %v123 = vsel %vm114, %v119, %v108
    %v124 = vsel %vm115, %v119, %v108
    %v125 = vsel %vm116, %v119, %v108
    %v126 = vsel %vm117, %v119, %v108
    %v127 = vsel %vm118, %v119, %v108
    %v128 = vstv %s41
    %v129 = vsel %vm111, %v128, %v109
    %v130 = vsel %vm112, %v128, %v109
    %v131 = vsel %vm113, %v128, %v109
    %v132 = vsel %vm114, %v128, %v109
    %v133 = vsel %vm115, %v128, %v109
    %v134 = vsel %vm116, %v128, %v109
    %v135 = vsel %vm117, %v128, %v109
    %v136 = vsel %vm118, %v128, %v109
    %v137 = vstv %s42
    %v138 = vsel %vm111, %v137, %v110
    %v139 = vsel %vm112, %v137, %v110
    %v140 = vsel %vm113, %v137, %v110
    %v141 = vsel %vm114, %v137, %v110
    %v142 = vsel %vm115, %v137, %v110
    %v143 = vsel %vm116, %v137, %v110
    %v144 = vsel %vm117, %v137, %v110
    %v145 = vsel %vm118, %v137, %v110
    %vm146 = vcmp.eq.s32.totalorder %v100, 2
    %vm147 = vcmp.eq.s32.totalorder %v101, 2
    %vm148 = vcmp.eq.s32.totalorder %v102, 2
    %vm149 = vcmp.eq.s32.totalorder %v103, 2
    %vm150 = vcmp.eq.s32.totalorder %v104, 2
    %vm151 = vcmp.eq.s32.totalorder %v105, 2
    %vm152 = vcmp.eq.s32.totalorder %v106, 2
    %vm153 = vcmp.eq.s32.totalorder %v107, 2
    %v154 = vstv %s43
    %v155 = vsel %vm146, %v154, %v120
    %v156 = vsel %vm147, %v154, %v121
    %v157 = vsel %vm148, %v154, %v122
    %v158 = vsel %vm149, %v154, %v123
    %v159 = vsel %vm150, %v154, %v124
    %v160 = vsel %vm151, %v154, %v125
    %v161 = vsel %vm152, %v154, %v126
    %v162 = vsel %vm153, %v154, %v127
    %v163 = vstv %s44
    %v164 = vsel %vm146, %v163, %v129
    %v165 = vsel %vm147, %v163, %v130
    %v166 = vsel %vm148, %v163, %v131
    %v167 = vsel %vm149, %v163, %v132
    %v168 = vsel %vm150, %v163, %v133
    %v169 = vsel %vm151, %v163, %v134
    %v170 = vsel %vm152, %v163, %v135
    %v171 = vsel %vm153, %v163, %v136
    %v172 = vstv %s45
    %v173 = vsel %vm146, %v172, %v138
    %v174 = vsel %vm147, %v172, %v139
    %v175 = vsel %vm148, %v172, %v140
    %v176 = vsel %vm149, %v172, %v141
    %v177 = vsel %vm150, %v172, %v142
    %v178 = vsel %vm151, %v172, %v143
    %v179 = vsel %vm152, %v172, %v144
    %v180 = vsel %vm153, %v172, %v145
    %vm181 = vcmp.eq.s32.totalorder %v100, 3
    %vm182 = vcmp.eq.s32.totalorder %v101, 3
    %vm183 = vcmp.eq.s32.totalorder %v102, 3
    %vm184 = vcmp.eq.s32.totalorder %v103, 3
    %vm185 = vcmp.eq.s32.totalorder %v104, 3
    %vm186 = vcmp.eq.s32.totalorder %v105, 3
    %vm187 = vcmp.eq.s32.totalorder %v106, 3
    %vm188 = vcmp.eq.s32.totalorder %v107, 3
    %v189 = vstv %s46
    %v190 = vsel %vm181, %v189, %v155
    %v191 = vsel %vm182, %v189, %v156
    %v192 = vsel %vm183, %v189, %v157
    %v193 = vsel %vm184, %v189, %v158
    %v194 = vsel %vm185, %v189, %v159
    %v195 = vsel %vm186, %v189, %v160
    %v196 = vsel %vm187, %v189, %v161
    %v197 = vsel %vm188, %v189, %v162
    %v198 = vstv %s47
    %v199 = vsel %vm181, %v198, %v164
    %v200 = vsel %vm182, %v198, %v165
    %v201 = vsel %vm183, %v198, %v166
    %v202 = vsel %vm184, %v198, %v167
    %v203 = vsel %vm185, %v198, %v168
    %v204 = vsel %vm186, %v198, %v169
    %v205 = vsel %vm187, %v198, %v170
    %v206 = vsel %vm188, %v198, %v171
    %v207 = vstv %s48
    %v208 = vsel %vm181, %v207, %v173
    %v209 = vsel %vm182, %v207, %v174
    %v210 = vsel %vm183, %v207, %v175
    %v211 = vsel %vm184, %v207, %v176
    %v212 = vsel %vm185, %v207, %v177
    %v213 = vsel %vm186, %v207, %v178
    %v214 = vsel %vm187, %v207, %v179
    %v215 = vsel %vm188, %v207, %v180
    %vm216 = vcmp.eq.s32.totalorder %v100, 4
    %vm217 = vcmp.eq.s32.totalorder %v101, 4
    %vm218 = vcmp.eq.s32.totalorder %v102, 4
    %vm219 = vcmp.eq.s32.totalorder %v103, 4
    %vm220 = vcmp.eq.s32.totalorder %v104, 4
    %vm221 = vcmp.eq.s32.totalorder %v105, 4
    %vm222 = vcmp.eq.s32.totalorder %v106, 4
    %vm223 = vcmp.eq.s32.totalorder %v107, 4
    %v224 = vstv %s49
    %v225 = vsel %vm216, %v224, %v190
    %v226 = vsel %vm217, %v224, %v191
    %v227 = vsel %vm218, %v224, %v192
    %v228 = vsel %vm219, %v224, %v193
    %v229 = vsel %vm220, %v224, %v194
    %v230 = vsel %vm221, %v224, %v195
    %v231 = vsel %vm222, %v224, %v196
    %v232 = vsel %vm223, %v224, %v197
    %v233 = vstv %s50
    %v234 = vsel %vm216, %v233, %v199
    %v235 = vsel %vm217, %v233, %v200
    %v236 = vsel %vm218, %v233, %v201
    %v237 = vsel %vm219, %v233, %v202
    %v238 = vsel %vm220, %v233, %v203
    %v239 = vsel %vm221, %v233, %v204
    %v240 = vsel %vm222, %v233, %v205
    %v241 = vsel %vm223, %v233, %v206
    %v242 = vstv %s51
    %v243 = vsel %vm216, %v242, %v208
    %v244 = vsel %vm217, %v242, %v209
    %v245 = vsel %vm218, %v242, %v210
    %v246 = vsel %vm219, %v242, %v211
    %v247 = vsel %vm220, %v242, %v212
    %v248 = vsel %vm221, %v242, %v213
    %v249 = vsel %vm222, %v242, %v214
    %v250 = vsel %vm223, %v242, %v215
    %vm251 = vcmp.eq.s32.totalorder %v100, 5
    %vm252 = vcmp.eq.s32.totalorder %v101, 5
    %vm253 = vcmp.eq.s32.totalorder %v102, 5
    %vm254 = vcmp.eq.s32.totalorder %v103, 5
    %vm255 = vcmp.eq.s32.totalorder %v104, 5
    %vm256 = vcmp.eq.s32.totalorder %v105, 5
    %vm257 = vcmp.eq.s32.totalorder %v106, 5
    %vm258 = vcmp.eq.s32.totalorder %v107, 5
    %v259 = vstv %s52
    %v260 = vsel %vm251, %v259, %v225
    %v261 = vsel %vm252, %v259, %v226
    %v262 = vsel %vm253, %v259, %v227
    %v263 = vsel %vm254, %v259, %v228
    %v264 = vsel %vm255, %v259, %v229
    %v265 = vsel %vm256, %v259, %v230
    %v266 = vsel %vm257, %v259, %v231
    %v267 = vsel %vm258, %v259, %v232
    %v268 = vstv %s53
    %v269 = vsel %vm251, %v268, %v234
    %v270 = vsel %vm252, %v268, %v235
    %v271 = vsel %vm253, %v268, %v236
    %v272 = vsel %vm254, %v268, %v237
    %v273 = vsel %vm255, %v268, %v238
    %v274 = vsel %vm256, %v268, %v239
    %v275 = vsel %vm257, %v268, %v240
    %v276 = vsel %vm258, %v268, %v241
    %v277 = vstv %s54
    %v278 = vsel %vm251, %v277, %v243
    %v279 = vsel %vm252, %v277, %v244
    %v280 = vsel %vm253, %v277, %v245
    %v281 = vsel %vm254, %v277, %v246
    %v282 = vsel %vm255, %v277, %v247
    %v283 = vsel %vm256, %v277, %v248
    %v284 = vsel %vm257, %v277, %v249
    %v285 = vsel %vm258, %v277, %v250
    %vm286 = vcmp.eq.s32.totalorder %v100, 6
    %vm287 = vcmp.eq.s32.totalorder %v101, 6
    %vm288 = vcmp.eq.s32.totalorder %v102, 6
    %vm289 = vcmp.eq.s32.totalorder %v103, 6
    %vm290 = vcmp.eq.s32.totalorder %v104, 6
    %vm291 = vcmp.eq.s32.totalorder %v105, 6
    %vm292 = vcmp.eq.s32.totalorder %v106, 6
    %vm293 = vcmp.eq.s32.totalorder %v107, 6
    %v294 = vstv %s55
    %v295 = vsel %vm286, %v294, %v260
    %v296 = vsel %vm287, %v294, %v261
    %v297 = vsel %vm288, %v294, %v262
    %v298 = vsel %vm289, %v294, %v263
    %v299 = vsel %vm290, %v294, %v264
    %v300 = vsel %vm291, %v294, %v265
    %v301 = vsel %vm292, %v294, %v266
    %v302 = vsel %vm293, %v294, %v267
    %v303 = vstv %s56
    %v304 = vsel %vm286, %v303, %v269
    %v305 = vsel %vm287, %v303, %v270
    %v306 = vsel %vm288, %v303, %v271
    %v307 = vsel %vm289, %v303, %v272
    %v308 = vsel %vm290, %v303, %v273
    %v309 = vsel %vm291, %v303, %v274
    %v310 = vsel %vm292, %v303, %v275
    %v311 = vsel %vm293, %v303, %v276
    %v312 = vstv %s57
    %v313 = vsel %vm286, %v312, %v278
    %v314 = vsel %vm287, %v312, %v279
    %v315 = vsel %vm288, %v312, %v280
    %v316 = vsel %vm289, %v312, %v281
    %v317 = vsel %vm290, %v312, %v282
    %v318 = vsel %vm291, %v312, %v283
    %v319 = vsel %vm292, %v312, %v284
    %v320 = vsel %vm293, %v312, %v285
    %vm321 = vcmp.eq.s32.totalorder %v100, 7
    %vm322 = vcmp.eq.s32.totalorder %v101, 7
    %vm323 = vcmp.eq.s32.totalorder %v102, 7
    %vm324 = vcmp.eq.s32.totalorder %v103, 7
    %vm325 = vcmp.eq.s32.totalorder %v104, 7
    %vm326 = vcmp.eq.s32.totalorder %v105, 7
    %vm327 = vcmp.eq.s32.totalorder %v106, 7
    %vm328 = vcmp.eq.s32.totalorder %v107, 7
    %v329 = vstv %s58
    %v330 = vsel %vm321, %v329, %v295
    %v331 = vsel %vm322, %v329, %v296
    %v332 = vsel %vm323, %v329, %v297
    %v333 = vsel %vm324, %v329, %v298
    %v334 = vsel %vm325, %v329, %v299
    %v335 = vsel %vm326, %v329, %v300
    %v336 = vsel %vm327, %v329, %v301
    %v337 = vsel %vm328, %v329, %v302
    %v338 = vstv %s59
    %v339 = vsel %vm321, %v338, %v304
    %v340 = vsel %vm322, %v338, %v305
    %v341 = vsel %vm323, %v338, %v306
    %v342 = vsel %vm324, %v338, %v307
    %v343 = vsel %vm325, %v338, %v308
    %v344 = vsel %vm326, %v338, %v309
    %v345 = vsel %vm327, %v338, %v310
    %v346 = vsel %vm328, %v338, %v311
    %v347 = vstv %s60
    %v348 = vsel %vm321, %v347, %v313
    %v349 = vsel %vm322, %v347, %v314
    %v350 = vsel %vm323, %v347, %v315
    %v351 = vsel %vm324, %v347, %v316
    %v352 = vsel %vm325, %v347, %v317
    %v353 = vsel %vm326, %v347, %v318
    %v354 = vsel %vm327, %v347, %v319
    %v355 = vsel %vm328, %v347, %v320
    %vm356 = vcmp.eq.s32.totalorder %v100, 8
    %vm357 = vcmp.eq.s32.totalorder %v101, 8
    %vm358 = vcmp.eq.s32.totalorder %v102, 8
    %vm359 = vcmp.eq.s32.totalorder %v103, 8
    %vm360 = vcmp.eq.s32.totalorder %v104, 8
    %vm361 = vcmp.eq.s32.totalorder %v105, 8
    %vm362 = vcmp.eq.s32.totalorder %v106, 8
    %vm363 = vcmp.eq.s32.totalorder %v107, 8
    %v364 = vstv %s61
    %v365 = vsel %vm356, %v364, %v330
    %v366 = vsel %vm357, %v364, %v331
    %v367 = vsel %vm358, %v364, %v332
    %v368 = vsel %vm359, %v364, %v333
    %v369 = vsel %vm360, %v364, %v334
    %v370 = vsel %vm361, %v364, %v335
    %v371 = vsel %vm362, %v364, %v336
    %v372 = vsel %vm363, %v364, %v337
    %v373 = vstv %s62
    %v374 = vsel %vm356, %v373, %v339
    %v375 = vsel %vm357, %v373, %v340
    %v376 = vsel %vm358, %v373, %v341
    %v377 = vsel %vm359, %v373, %v342
    %v378 = vsel %vm360, %v373, %v343
    %v379 = vsel %vm361, %v373, %v344
    %v380 = vsel %vm362, %v373, %v345
    %v381 = vsel %vm363, %v373, %v346
    %v382 = vstv %s63
    %v383 = vsel %vm356, %v382, %v348
    %v384 = vsel %vm357, %v382, %v349
    %v385 = vsel %vm358, %v382, %v350
    %v386 = vsel %vm359, %v382, %v351
    %v387 = vsel %vm360, %v382, %v352
    %v388 = vsel %vm361, %v382, %v353
    %v389 = vsel %vm362, %v382, %v354
    %v390 = vsel %vm363, %v382, %v355
    %vm391 = vcmp.eq.s32.totalorder %v100, 9
    %vm392 = vcmp.eq.s32.totalorder %v101, 9
    %vm393 = vcmp.eq.s32.totalorder %v102, 9
    %vm394 = vcmp.eq.s32.totalorder %v103, 9
    %vm395 = vcmp.eq.s32.totalorder %v104, 9
    %vm396 = vcmp.eq.s32.totalorder %v105, 9
    %vm397 = vcmp.eq.s32.totalorder %v106, 9
    %vm398 = vcmp.eq.s32.totalorder %v107, 9
    %v399 = vstv %s64
    %v400 = vsel %vm391, %v399, %v365
    %v401 = vsel %vm392, %v399, %v366
    %v402 = vsel %vm393, %v399, %v367
    %v403 = vsel %vm394, %v399, %v368
    %v404 = vsel %vm395, %v399, %v369
    %v405 = vsel %vm396, %v399, %v370
    %v406 = vsel %vm397, %v399, %v371
    %v407 = vsel %vm398, %v399, %v372
    %v408 = vstv %s65
    %v409 = vsel %vm391, %v408, %v374
    %v410 = vsel %vm392, %v408, %v375
    %v411 = vsel %vm393, %v408, %v376
    %v412 = vsel %vm394, %v408, %v377
    %v413 = vsel %vm395, %v408, %v378
    %v414 = vsel %vm396, %v408, %v379
    %v415 = vsel %vm397, %v408, %v380
    %v416 = vsel %vm398, %v408, %v381
    %v417 = vstv %s66
    %v418 = vsel %vm391, %v417, %v383
    %v419 = vsel %vm392, %v417, %v384
    %v420 = vsel %vm393, %v417, %v385
    %v421 = vsel %vm394, %v417, %v386
    %v422 = vsel %vm395, %v417, %v387
    %v423 = vsel %vm396, %v417, %v388
    %v424 = vsel %vm397, %v417, %v389
    %v425 = vsel %vm398, %v417, %v390
    %vm426 = vcmp.eq.s32.totalorder %v100, 10
    %vm427 = vcmp.eq.s32.totalorder %v101, 10
    %vm428 = vcmp.eq.s32.totalorder %v102, 10
    %vm429 = vcmp.eq.s32.totalorder %v103, 10
    %vm430 = vcmp.eq.s32.totalorder %v104, 10
    %vm431 = vcmp.eq.s32.totalorder %v105, 10
    %vm432 = vcmp.eq.s32.totalorder %v106, 10
    %vm433 = vcmp.eq.s32.totalorder %v107, 10
    %v434 = vstv %s67
    %v435 = vsel %vm426, %v434, %v400
    %v436 = vsel %vm427, %v434, %v401
    %v437 = vsel %vm428, %v434, %v402
    %v438 = vsel %vm429, %v434, %v403
    %v439 = vsel %vm430, %v434, %v404
    %v440 = vsel %vm431, %v434, %v405
    %v441 = vsel %vm432, %v434, %v406
    %v442 = vsel %vm433, %v434, %v407
    %v443 = vstv %s68
    %v444 = vsel %vm426, %v443, %v409
    %v445 = vsel %vm427, %v443, %v410
    %v446 = vsel %vm428, %v443, %v411
    %v447 = vsel %vm429, %v443, %v412
    %v448 = vsel %vm430, %v443, %v413
    %v449 = vsel %vm431, %v443, %v414
    %v450 = vsel %vm432, %v443, %v415
    %v451 = vsel %vm433, %v443, %v416
    %v452 = vstv %s69
    %v453 = vsel %vm426, %v452, %v418
    %v454 = vsel %vm427, %v452, %v419
    %v455 = vsel %vm428, %v452, %v420
    %v456 = vsel %vm429, %v452, %v421
    %v457 = vsel %vm430, %v452, %v422
    %v458 = vsel %vm431, %v452, %v423
    %v459 = vsel %vm432, %v452, %v424
    %v460 = vsel %vm433, %v452, %v425
    %vm461 = vcmp.eq.s32.totalorder %v100, 11
    %vm462 = vcmp.eq.s32.totalorder %v101, 11
    %vm463 = vcmp.eq.s32.totalorder %v102, 11
    %vm464 = vcmp.eq.s32.totalorder %v103, 11
    %vm465 = vcmp.eq.s32.totalorder %v104, 11
    %vm466 = vcmp.eq.s32.totalorder %v105, 11
    %vm467 = vcmp.eq.s32.totalorder %v106, 11
    %vm468 = vcmp.eq.s32.totalorder %v107, 11
    %v469 = vstv %s70
    %v470 = vsel %vm461, %v469, %v435
    %v471 = vsel %vm462, %v469, %v436
    %v472 = vsel %vm463, %v469, %v437
    %v473 = vsel %vm464, %v469, %v438
    %v474 = vsel %vm465, %v469, %v439
    %v475 = vsel %vm466, %v469, %v440
    %v476 = vsel %vm467, %v469, %v441
    %v477 = vsel %vm468, %v469, %v442
    %v478 = vstv %s71
    %v479 = vsel %vm461, %v478, %v444
    %v480 = vsel %vm462, %v478, %v445
    %v481 = vsel %vm463, %v478, %v446
    %v482 = vsel %vm464, %v478, %v447
    %v483 = vsel %vm465, %v478, %v448
    %v484 = vsel %vm466, %v478, %v449
    %v485 = vsel %vm467, %v478, %v450
    %v486 = vsel %vm468, %v478, %v451
    %v487 = vstv %s72
    %v488 = vsel %vm461, %v487, %v453
    %v489 = vsel %vm462, %v487, %v454
    %v490 = vsel %vm463, %v487, %v455
    %v491 = vsel %vm464, %v487, %v456
    %v492 = vsel %vm465, %v487, %v457
    %v493 = vsel %vm466, %v487, %v458
    %v494 = vsel %vm467, %v487, %v459
    %v495 = vsel %vm468, %v487, %v460
    %vm496 = vcmp.eq.s32.totalorder %v100, 12
    %vm497 = vcmp.eq.s32.totalorder %v101, 12
    %vm498 = vcmp.eq.s32.totalorder %v102, 12
    %vm499 = vcmp.eq.s32.totalorder %v103, 12
    %vm500 = vcmp.eq.s32.totalorder %v104, 12
    %vm501 = vcmp.eq.s32.totalorder %v105, 12
    %vm502 = vcmp.eq.s32.totalorder %v106, 12
    %vm503 = vcmp.eq.s32.totalorder %v107, 12
    %v504 = vstv %s73
    %v505 = vsel %vm496, %v504, %v470
    %v506 = vsel %vm497, %v504, %v471
    %v507 = vsel %vm498, %v504, %v472
    %v508 = vsel %vm499, %v504, %v473
    %v509 = vsel %vm500, %v504, %v474
    %v510 = vsel %vm501, %v504, %v475
    %v511 = vsel %vm502, %v504, %v476
    %v512 = vsel %vm503, %v504, %v477
    %v513 = vstv %s74
    %v514 = vsel %vm496, %v513, %v479
    %v515 = vsel %vm497, %v513, %v480
    %v516 = vsel %vm498, %v513, %v481
    %v517 = vsel %vm499, %v513, %v482
    %v518 = vsel %vm500, %v513, %v483
    %v519 = vsel %vm501, %v513, %v484
    %v520 = vsel %vm502, %v513, %v485
    %v521 = vsel %vm503, %v513, %v486
    %v522 = vstv %s75
    %v523 = vsel %vm496, %v522, %v488
    %v524 = vsel %vm497, %v522, %v489
    %v525 = vsel %vm498, %v522, %v490
    %v526 = vsel %vm499, %v522, %v491
    %v527 = vsel %vm500, %v522, %v492
    %v528 = vsel %vm501, %v522, %v493
    %v529 = vsel %vm502, %v522, %v494
    %v530 = vsel %vm503, %v522, %v495
    %vm531 = vcmp.eq.s32.totalorder %v100, 13
    %vm532 = vcmp.eq.s32.totalorder %v101, 13
    %vm533 = vcmp.eq.s32.totalorder %v102, 13
    %vm534 = vcmp.eq.s32.totalorder %v103, 13
    %vm535 = vcmp.eq.s32.totalorder %v104, 13
    %vm536 = vcmp.eq.s32.totalorder %v105, 13
    %vm537 = vcmp.eq.s32.totalorder %v106, 13
    %vm538 = vcmp.eq.s32.totalorder %v107, 13
    %v539 = vstv %s76
    %v540 = vsel %vm531, %v539, %v505
    %v541 = vsel %vm532, %v539, %v506
    %v542 = vsel %vm533, %v539, %v507
    %v543 = vsel %vm534, %v539, %v508
    %v544 = vsel %vm535, %v539, %v509
    %v545 = vsel %vm536, %v539, %v510
    %v546 = vsel %vm537, %v539, %v511
    %v547 = vsel %vm538, %v539, %v512
    %v548 = vstv %s77
    %v549 = vsel %vm531, %v548, %v514
    %v550 = vsel %vm532, %v548, %v515
    %v551 = vsel %vm533, %v548, %v516
    %v552 = vsel %vm534, %v548, %v517
    %v553 = vsel %vm535, %v548, %v518
    %v554 = vsel %vm536, %v548, %v519
    %v555 = vsel %vm537, %v548, %v520
    %v556 = vsel %vm538, %v548, %v521
    %v557 = vstv %s78
    %v558 = vsel %vm531, %v557, %v523
    %v559 = vsel %vm532, %v557, %v524
    %v560 = vsel %vm533, %v557, %v525
    %v561 = vsel %vm534, %v557, %v526
    %v562 = vsel %vm535, %v557, %v527
    %v563 = vsel %vm536, %v557, %v528
    %v564 = vsel %vm537, %v557, %v529
    %v565 = vsel %vm538, %v557, %v530
    %vm566 = vcmp.eq.s32.totalorder %v100, 14
    %vm567 = vcmp.eq.s32.totalorder %v101, 14
    %vm568 = vcmp.eq.s32.totalorder %v102, 14
    %vm569 = vcmp.eq.s32.totalorder %v103, 14
    %vm570 = vcmp.eq.s32.totalorder %v104, 14
    %vm571 = vcmp.eq.s32.totalorder %v105, 14
    %vm572 = vcmp.eq.s32.totalorder %v106, 14
    %vm573 = vcmp.eq.s32.totalorder %v107, 14
    %v574 = vstv %s79
    %v575 = vsel %vm566, %v574, %v540
    %v576 = vsel %vm567, %v574, %v541
    %v577 = vsel %vm568, %v574, %v542
    %v578 = vsel %vm569, %v574, %v543
    %v579 = vsel %vm570, %v574, %v544
    %v580 = vsel %vm571, %v574, %v545
    %v581 = vsel %vm572, %v574, %v546
    %v582 = vsel %vm573, %v574, %v547
    %v583 = vstv %s80
    %v584 = vsel %vm566, %v583, %v549
    %v585 = vsel %vm567, %v583, %v550
    %v586 = vsel %vm568, %v583, %v551
    %v587 = vsel %vm569, %v583, %v552
    %v588 = vsel %vm570, %v583, %v553
    %v589 = vsel %vm571, %v583, %v554
    %v590 = vsel %vm572, %v583, %v555
    %v591 = vsel %vm573, %v583, %v556
    %v592 = vstv %s81
    %v593 = vsel %vm566, %v592, %v558
    %v594 = vsel %vm567, %v592, %v559
    %v595 = vsel %vm568, %v592, %v560
    %v596 = vsel %vm569, %v592, %v561
    %v597 = vsel %vm570, %v592, %v562
    %v598 = vsel %vm571, %v592, %v563
    %v599 = vsel %vm572, %v592, %v564
    %v600 = vsel %vm573, %v592, %v565
    %vm601 = vcmp.eq.s32.totalorder %v100, 15
    %vm602 = vcmp.eq.s32.totalorder %v101, 15
    %vm603 = vcmp.eq.s32.totalorder %v102, 15
    %vm604 = vcmp.eq.s32.totalorder %v103, 15
    %vm605 = vcmp.eq.s32.totalorder %v104, 15
    %vm606 = vcmp.eq.s32.totalorder %v105, 15
    %vm607 = vcmp.eq.s32.totalorder %v106, 15
    %vm608 = vcmp.eq.s32.totalorder %v107, 15
    %v609 = vstv %s82
    %v610 = vsel %vm601, %v609, %v575
    %v611 = vsel %vm602, %v609, %v576
    %v612 = vsel %vm603, %v609, %v577
    %v613 = vsel %vm604, %v609, %v578
    %v614 = vsel %vm605, %v609, %v579
    %v615 = vsel %vm606, %v609, %v580
    %v616 = vsel %vm607, %v609, %v581
    %v617 = vsel %vm608, %v609, %v582
    %v618 = vstv %s83
    %v619 = vsel %vm601, %v618, %v584
    %v620 = vsel %vm602, %v618, %v585
    %v621 = vsel %vm603, %v618, %v586
    %v622 = vsel %vm604, %v618, %v587
    %v623 = vsel %vm605, %v618, %v588
    %v624 = vsel %vm606, %v618, %v589
    %v625 = vsel %vm607, %v618, %v590
    %v626 = vsel %vm608, %v618, %v591
    %v627 = vstv %s84
    %v628 = vsel %vm601, %v627, %v593
    %v629 = vsel %vm602, %v627, %v594
    %v630 = vsel %vm603, %v627, %v595
    %v631 = vsel %vm604, %v627, %v596
    %v632 = vsel %vm605, %v627, %v597
    %v633 = vsel %vm606, %v627, %v598
    %v634 = vsel %vm607, %v627, %v599
    %v635 = vsel %vm608, %v627, %v600
    %vm636 = vcmp.eq.s32.totalorder %v100, 16
    %vm637 = vcmp.eq.s32.totalorder %v101, 16
    %vm638 = vcmp.eq.s32.totalorder %v102, 16
    %vm639 = vcmp.eq.s32.totalorder %v103, 16
    %vm640 = vcmp.eq.s32.totalorder %v104, 16
    %vm641 = vcmp.eq.s32.totalorder %v105, 16
    %vm642 = vcmp.eq.s32.totalorder %v106, 16
    %vm643 = vcmp.eq.s32.totalorder %v107, 16
    %v644 = vstv %s85
    %v645 = vsel %vm636, %v644, %v610
    %v646 = vsel %vm637, %v644, %v611
    %v647 = vsel %vm638, %v644, %v612
    %v648 = vsel %vm639, %v644, %v613
    %v649 = vsel %vm640, %v644, %v614
    %v650 = vsel %vm641, %v644, %v615
    %v651 = vsel %vm642, %v644, %v616
    %v652 = vsel %vm643, %v644, %v617
    %v653 = vstv %s86
    %v654 = vsel %vm636, %v653, %v619
    %v655 = vsel %vm637, %v653, %v620
    %v656 = vsel %vm638, %v653, %v621
    %v657 = vsel %vm639, %v653, %v622
    %v658 = vsel %vm640, %v653, %v623
    %v659 = vsel %vm641, %v653, %v624
    %v660 = vsel %vm642, %v653, %v625
    %v661 = vsel %vm643, %v653, %v626
    %v662 = vstv %s87
    %v663 = vsel %vm636, %v662, %v628
    %v664 = vsel %vm637, %v662, %v629
    %v665 = vsel %vm638, %v662, %v630
    %v666 = vsel %vm639, %v662, %v631
    %v667 = vsel %vm640, %v662, %v632
    %v668 = vsel %vm641, %v662, %v633
    %v669 = vsel %vm642, %v662, %v634
    %v670 = vsel %vm643, %v662, %v635
    %vm671 = vcmp.eq.s32.totalorder %v100, 17
    %vm672 = vcmp.eq.s32.totalorder %v101, 17
    %vm673 = vcmp.eq.s32.totalorder %v102, 17
    %vm674 = vcmp.eq.s32.totalorder %v103, 17
    %vm675 = vcmp.eq.s32.totalorder %v104, 17
    %vm676 = vcmp.eq.s32.totalorder %v105, 17
    %vm677 = vcmp.eq.s32.totalorder %v106, 17
    %vm678 = vcmp.eq.s32.totalorder %v107, 17
    %v679 = vstv %s88
    %v680 = vsel %vm671, %v679, %v645
    %v681 = vsel %vm672, %v679, %v646
    %v682 = vsel %vm673, %v679, %v647
    %v683 = vsel %vm674, %v679, %v648
    %v684 = vsel %vm675, %v679, %v649
    %v685 = vsel %vm676, %v679, %v650
    %v686 = vsel %vm677, %v679, %v651
    %v687 = vsel %vm678, %v679, %v652
    %v688 = vstv %s89
    %v689 = vsel %vm671, %v688, %v654
    %v690 = vsel %vm672, %v688, %v655
    %v691 = vsel %vm673, %v688, %v656
    %v692 = vsel %vm674, %v688, %v657
    %v693 = vsel %vm675, %v688, %v658
    %v694 = vsel %vm676, %v688, %v659
    %v695 = vsel %vm677, %v688, %v660
    %v696 = vsel %vm678, %v688, %v661
    %v697 = vstv %s90
    %v698 = vsel %vm671, %v697, %v663
    %v699 = vsel %vm672, %v697, %v664
    %v700 = vsel %vm673, %v697, %v665
    %v701 = vsel %vm674, %v697, %v666
    %v702 = vsel %vm675, %v697, %v667
    %v703 = vsel %vm676, %v697, %v668
    %v704 = vsel %vm677, %v697, %v669
    %v705 = vsel %vm678, %v697, %v670
    %vm706 = vcmp.eq.s32.totalorder %v100, 18
    %vm707 = vcmp.eq.s32.totalorder %v101, 18
    %vm708 = vcmp.eq.s32.totalorder %v102, 18
    %vm709 = vcmp.eq.s32.totalorder %v103, 18
    %vm710 = vcmp.eq.s32.totalorder %v104, 18
    %vm711 = vcmp.eq.s32.totalorder %v105, 18
    %vm712 = vcmp.eq.s32.totalorder %v106, 18
    %vm713 = vcmp.eq.s32.totalorder %v107, 18
    %v714 = vstv %s91
    %v715 = vsel %vm706, %v714, %v680
    %v716 = vsel %vm707, %v714, %v681
    %v717 = vsel %vm708, %v714, %v682
    %v718 = vsel %vm709, %v714, %v683
    %v719 = vsel %vm710, %v714, %v684
    %v720 = vsel %vm711, %v714, %v685
    %v721 = vsel %vm712, %v714, %v686
    %v722 = vsel %vm713, %v714, %v687
    %v723 = vstv %s92
    %v724 = vsel %vm706, %v723, %v689
    %v725 = vsel %vm707, %v723, %v690
    %v726 = vsel %vm708, %v723, %v691
    %v727 = vsel %vm709, %v723, %v692
    %v728 = vsel %vm710, %v723, %v693
    %v729 = vsel %vm711, %v723, %v694
    %v730 = vsel %vm712, %v723, %v695
    %v731 = vsel %vm713, %v723, %v696
    %v732 = vstv %s93
    %v733 = vsel %vm706, %v732, %v698
    %v734 = vsel %vm707, %v732, %v699
    %v735 = vsel %vm708, %v732, %v700
    %v736 = vsel %vm709, %v732, %v701
    %v737 = vsel %vm710, %v732, %v702
    %v738 = vsel %vm711, %v732, %v703
    %v739 = vsel %vm712, %v732, %v704
    %v740 = vsel %vm713, %v732, %v705
    %vm741 = vcmp.eq.s32.totalorder %v100, 19
    %vm742 = vcmp.eq.s32.totalorder %v101, 19
    %vm743 = vcmp.eq.s32.totalorder %v102, 19
    %vm744 = vcmp.eq.s32.totalorder %v103, 19
    %vm745 = vcmp.eq.s32.totalorder %v104, 19
    %vm746 = vcmp.eq.s32.totalorder %v105, 19
    %vm747 = vcmp.eq.s32.totalorder %v106, 19
    %vm748 = vcmp.eq.s32.totalorder %v107, 19
    %v749 = vstv %s94
    %v750 = vsel %vm741, %v749, %v715
    %v751 = vsel %vm742, %v749, %v716
    %v752 = vsel %vm743, %v749, %v717
    %v753 = vsel %vm744, %v749, %v718
    %v754 = vsel %vm745, %v749, %v719
    %v755 = vsel %vm746, %v749, %v720
    %v756 = vsel %vm747, %v749, %v721
    %v757 = vsel %vm748, %v749, %v722
    %v758 = vstv %s95
    %v759 = vsel %vm741, %v758, %v724
    %v760 = vsel %vm742, %v758, %v725
    %v761 = vsel %vm743, %v758, %v726
    %v762 = vsel %vm744, %v758, %v727
    %v763 = vsel %vm745, %v758, %v728
    %v764 = vsel %vm746, %v758, %v729
    %v765 = vsel %vm747, %v758, %v730
    %v766 = vsel %vm748, %v758, %v731
    %v767 = vstv %s96
    %v768 = vsel %vm741, %v767, %v733
    %v769 = vsel %vm742, %v767, %v734
    %v770 = vsel %vm743, %v767, %v735
    %v771 = vsel %vm744, %v767, %v736
    %v772 = vsel %vm745, %v767, %v737
    %v773 = vsel %vm746, %v767, %v738
    %v774 = vsel %vm747, %v767, %v739
    %v775 = vsel %vm748, %v767, %v740
    %s776 = smul.addr %s97, 8
    %s777 = scalar_lea.vmem [#allocation7], %s776
    %778 = vst [vmem:[%s777] sm:$0xff] %v750
    %779 = vst [vmem:[%s777 + $0x8] sm:$0xff] %v751
    %780 = vst [vmem:[%s777 + $0x10] sm:$0xff] %v752
    %781 = vst [vmem:[%s777 + $0x18] sm:$0xff] %v753
    %782 = vst [vmem:[%s777 + $0x20] sm:$0xff] %v754
    %783 = vst [vmem:[%s777 + $0x28] sm:$0xff] %v755
    %784 = vst [vmem:[%s777 + $0x30] sm:$0xff] %v756
    %785 = vst [vmem:[%s777 + $0x38] sm:$0xff] %v757
    %s786 = sadd.s32 %s97, 8
    %s787 = smul.addr %s786, 8
    %s788 = scalar_lea.vmem [#allocation7], %s787
    %789 = vst [vmem:[%s788] sm:$0xff] %v759
    %790 = vst [vmem:[%s788 + $0x8] sm:$0xff] %v760
    %791 = vst [vmem:[%s788 + $0x10] sm:$0xff] %v761
    %792 = vst [vmem:[%s788 + $0x18] sm:$0xff] %v762
    %793 = vst [vmem:[%s788 + $0x20] sm:$0xff] %v763
    %794 = vst [vmem:[%s788 + $0x28] sm:$0xff] %v764
    %795 = vst [vmem:[%s788 + $0x30] sm:$0xff] %v765
    %796 = vst [vmem:[%s788 + $0x38] sm:$0xff] %v766
    %s797 = sadd.s32 %s97, 16
    %s798 = smul.addr %s797, 8
    %s799 = scalar_lea.vmem [#allocation7], %s798
    %800 = vst [vmem:[%s799] sm:$0xff] %v768
    %801 = vst [vmem:[%s799 + $0x8] sm:$0xff] %v769
    %802 = vst [vmem:[%s799 + $0x10] sm:$0xff] %v770
    %803 = vst [vmem:[%s799 + $0x18] sm:$0xff] %v771
    %804 = vst [vmem:[%s799 + $0x20] sm:$0xff] %v772
    %805 = vst [vmem:[%s799 + $0x28] sm:$0xff] %v773
    %806 = vst [vmem:[%s799 + $0x30] sm:$0xff] %v774
    %807 = vst [vmem:[%s799 + $0x38] sm:$0xff] %v775
    // Predicated region
    $region18: #{tpu_custom_call.1} parent=1 // pred_check
      _
    $region19: #{tpu_custom_call.1} parent=1 // pred_check_branch
      %809 = sbr.rel (0) target = $region21
    $region20: #{tpu_custom_call.1} parent=1 // pred_region
      %s811 = ssub.s32 3072, 3072
      %812 = vsyncadd [#allocation4], %s811
      %s813 = sshll.u32 [#allocation7], 4
      %s814 = int_to_ptr.vmem [resolvable:$true] %s813
      %819 = dma.vmem_to_hbm [thread:$0]  %s814, 3072, %s2, [#allocation4], 1024, 1024, 64
    $region21: #{tpu_custom_call.1} parent=1 // pred_fallthru
      _
    // Predicated region
    $region22: #{tpu_custom_call.1} parent=1 // pred_check
      _
    $region23: #{tpu_custom_call.1} parent=1 // pred_check_branch
      %821 = sbr.rel (0) target = $region25
    $region24: #{tpu_custom_call.1} parent=1 // pred_region
      %822 = dma.done [#allocation4], 3072
    $region25: #{tpu_custom_call.1} parent=1 // pred_fallthru
      _
    %823 = vsyncpa [#allocation3], 1
    %824 = vsyncpa [#allocation4], 1
    %825 = vsyncpa [#allocation5], 1

</llo_original>
